<compile_context>
chip_gen: v5e
topology: v5e:2x2
jax: 0.10.0
libtpu: 0.0.40
codegen_flags: <defaults>
</compile_context>

<pallas_src>
import functools

import jax
import jax.numpy as jnp
from jax.experimental import pallas as pl
from jax.experimental.pallas import tpu as pltpu

MASK_SIZE = 16   # MaskRegressNet internal mask resolution
MAP_SIZE = 64    # bbox layout map resolution fed to the ISLA-norm layers

# pltpu.roll is assumed to follow jnp.roll semantics (result[i] = x[i - shift]); a tiny runtime
# probe (run in __main__ before any tracing) flips the conv tap alignment if the installed
# lowering uses the opposite convention, so the conv stays correct either way.
_ROLL_IS_JNP = True


def _detect_roll_convention():
    global _ROLL_IS_JNP
    x = jnp.arange(8 * 128, dtype=jnp.float32).reshape(8, 128)

    def kern(x_ref, o_ref):
        o_ref[...] = pltpu.roll(x_ref[...], 1, 0)

    y = pl.pallas_call(kern, out_shape=jax.ShapeDtypeStruct((8, 128), jnp.float32))(x)
    _ROLL_IS_JNP = bool(jnp.allclose(y, jnp.roll(x, 1, 0)))


@functools.lru_cache(maxsize=None)
def _conv_vmem_limit():
    # v5e/v6e: 128 MiB physical -> ~96 MiB scoped; v7x: 64 MiB physical -> ~48 MiB scoped.
    try:
        cap = int(pltpu.get_tpu_info().vmem_capacity_bytes)
        return int(min(100 * 1024 * 1024, (cap * 3) // 4))
    except Exception:
        return 64 * 1024 * 1024


# ---------------------------------------------------------------------------
# Fused GEMM: out = act(x @ w + b)
# ---------------------------------------------------------------------------

def _apply_act(y, act):
    if act == "relu":
        return jnp.maximum(y, 0.0)
    if act == "sigmoid":
        return jax.nn.sigmoid(y)
    if act == "tanh":
        return jnp.tanh(y)
    return y


def _mm_kernel(x_ref, w_ref, b_ref, o_ref, *, act):
    y = jnp.dot(x_ref[...], w_ref[...], preferred_element_type=jnp.float32)
    y = y + b_ref[...]
    o_ref[...] = _apply_act(y, act).astype(o_ref.dtype)


def _pick_tile(dim, candidates):
    for t in candidates:
        if dim > t and dim % t == 0:
            return t
    return dim


def pallas_matmul(x, w, b, act="none", out_dtype=jnp.float32):
    """act(x @ w + b); x:(M,K), w:(K,N) (already bf16), b:(N,).  bf16 MXU, f32 accumulation."""
    x = x.astype(jnp.bfloat16)          # no-op for bf16 activations
    w = w.astype(jnp.bfloat16)          # no-op: weights are pre-cast at construction
    M, K = x.shape
    Kw, N = w.shape
    assert K == Kw
    tm = _pick_tile(M, (4096, 2048, 1024, 512, 256))
    tn = _pick_tile(N, (1024, 512))
    b2 = b.reshape(1, N).astype(jnp.float32)
    cost = pl.CostEstimate(
        flops=2 * M * N * K, transcendentals=0,
        bytes_accessed=2 * M * K + 2 * K * N + M * N * jnp.dtype(out_dtype).itemsize + 4 * N)
    return pl.pallas_call(
        functools.partial(_mm_kernel, act=act),
        out_shape=jax.ShapeDtypeStruct((M, N), out_dtype),
        grid=(M // tm, N // tn),
        in_specs=[
            pl.BlockSpec((tm, K), lambda i, j: (i, 0)),
            pl.BlockSpec((K, tn), lambda i, j: (0, j)),
            pl.BlockSpec((1, tn), lambda i, j: (0, j)),
        ],
        out_specs=pl.BlockSpec((tm, tn), lambda i, j: (i, j)),
        compiler_params=pltpu.CompilerParams(dimension_semantics=("parallel", "parallel")),
        cost_estimate=cost,
    )(x, w, b2)


# ---------------------------------------------------------------------------
# Direct 3x3 conv (stride 1, pad 1): contiguous row-slab matmuls + XLU roll alignment
# ---------------------------------------------------------------------------

def _conv_taps(x_ref, w_ref, H, Wp, roll_jnp):
    """f32 sum of the 9 tap matmuls for one Cin tile.

    Each dy row slab x_ref[dy:dy+H] is a contiguous (H, Wp, ck) view whose flattening to
    (H*Wp, ck) is layout-free because Wp % 8 == 0, so MXU operands need no VMEM relayout
    copies.  The 3 dx taps are re-aligned on the f32 matmul results with pltpu.roll (XLU),
    not with strided slices (which would burn vld/vst slots on full-tile copies).
    """
    ck = x_ref.shape[-1]
    total = None
    for dy in range(3):
        slab = x_ref[dy:dy + H].reshape(H * Wp, ck)
        for dx in range(3):
            m = jnp.dot(slab, w_ref[dy * 3 + dx], preferred_element_type=jnp.float32)
            shift = (2 - dx) if roll_jnp else dx
            if shift:
                m = pltpu.roll(m, shift, 0)
            total = m if total is None else total + m
    return total                                            # (H*Wp, Cout) f32


def _conv_epilogue(total, b_ref, r_ref, o_ref, H, W, Wp, off):
    y = total.reshape(H, Wp, -1)[:, off:off + W, :] + b_ref[0]
    if r_ref is not None:
        y = y + r_ref[...].astype(jnp.float32)               # fused shortcut add
    o_ref[...] = y.astype(o_ref.dtype)


def _conv3x3_direct_kernel(x_ref, w_ref, b_ref, o_ref, *, H, W, Wp, roll_jnp):
    total = _conv_taps(x_ref, w_ref, H, Wp, roll_jnp)
    _conv_epilogue(total, b_ref, None, o_ref, H, W, Wp, 2 if roll_jnp else 0)


def _conv3x3_direct_res_kernel(x_ref, w_ref, b_ref, r_ref, o_ref, *, H, W, Wp, roll_jnp):
    total = _conv_taps(x_ref, w_ref, H, Wp, roll_jnp)
    _conv_epilogue(total, b_ref, r_ref, o_ref, H, W, Wp, 2 if roll_jnp else 0)


def _conv3x3_acc_kernel(x_ref, w_ref, b_ref, o_ref, acc_ref, *, H, W, Wp, roll_jnp):
    k = pl.program_id(1)
    total = _conv_taps(x_ref, w_ref, H, Wp, roll_jnp)

    @pl.when(k == 0)
    def _():
        acc_ref[...] = total

    @pl.when(k != 0)
    def _():
        acc_ref[...] += total

    @pl.when(k == pl.num_programs(1) - 1)
    def _():
        _conv_epilogue(acc_ref[...], b_ref, None, o_ref, H, W, Wp, 2 if roll_jnp else 0)


def _conv3x3_acc_res_kernel(x_ref, w_ref, b_ref, r_ref, o_ref, acc_ref, *, H, W, Wp, roll_jnp):
    k = pl.program_id(1)
    total = _conv_taps(x_ref, w_ref, H, Wp, roll_jnp)

    @pl.when(k == 0)
    def _():
        acc_ref[...] = total

    @pl.when(k != 0)
    def _():
        acc_ref[...] += total

    @pl.when(k == pl.num_programs(1) - 1)
    def _():
        _conv_epilogue(acc_ref[...], b_ref, r_ref, o_ref, H, W, Wp, 2 if roll_jnp else 0)


def conv3x3(x, w, b, residual=None, out_dtype=jnp.bfloat16, ck_max=256):
    """3x3 / stride 1 / pad 1 conv.  x: (N,H,W,Cin) NHWC bf16, w: (3,3,Cin,Cout) bf16.

    Per Cin tile: 9 row-slab MXU matmuls on contiguous views of the W-padded input, dx taps
    re-aligned via pltpu.roll on the f32 results; bias + optional fused residual add in the
    epilogue.  Cin tiles accumulate in a VMEM f32 scratch only when kt > 1.  Returns NHWC.
    TODO(synk): for batch-1 v7x inference, add a halo'd row-slab grid axis so both TensorCores
    get work and the 128x128 working set shrinks further.
    """
    N, H, W, Cin = x.shape
    Cout = w.shape[-1]
    roll_jnp = _ROLL_IS_JNP
    Wp = ((W + 2 + 7) // 8) * 8                               # pad W so slab flattening is free
    xp = jnp.pad(x.astype(jnp.bfloat16), ((0, 0), (1, 1), (1, Wp - W - 1), (0, 0)))
    w9 = w.astype(jnp.bfloat16).reshape(9, Cin, Cout)
    b2 = b.reshape(1, Cout).astype(jnp.float32)

    ck = ck_max if (Cin > ck_max and Cin % ck_max == 0) else Cin
    kt = Cin // ck
    has_res = residual is not None

    cost = pl.CostEstimate(
        flops=2 * N * H * W * 9 * Cin * Cout, transcendentals=0,
        bytes_accessed=2 * xp.size + 2 * w9.size + (4 if has_res else 2) * N * H * W * Cout)
    cparams = pltpu.CompilerParams(
        dimension_semantics=("parallel",) if kt == 1 else ("parallel", "arbitrary"),
        vmem_limit_bytes=_conv_vmem_limit())

    if kt == 1:
        grid = (N,)
        x_spec = pl.BlockSpec((None, H + 2, Wp, Cin), lambda n: (n, 0, 0, 0))
        w_spec = pl.BlockSpec((9, Cin, Cout), lambda n: (0, 0, 0))
        b_spec = pl.BlockSpec((1, Cout), lambda n: (0, 0))
        r_spec = pl.BlockSpec((None, H, W, Cout), lambda n: (n, 0, 0, 0))
        o_spec = pl.BlockSpec((None, H, W, Cout), lambda n: (n, 0, 0, 0))
        scratch = []
        kernel = _conv3x3_direct_res_kernel if has_res else _conv3x3_direct_kernel
    else:
        grid = (N, kt)
        x_spec = pl.BlockSpec((None, H + 2, Wp, ck), lambda n, k: (n, 0, 0, k))
        w_spec = pl.BlockSpec((9, ck, Cout), lambda n, k: (0, k, 0))
        b_spec = pl.BlockSpec((1, Cout), lambda n, k: (0, 0))
        r_spec = pl.BlockSpec((None, H, W, Cout), lambda n, k: (n, 0, 0, 0))
        o_spec = pl.BlockSpec((None, H, W, Cout), lambda n, k: (n, 0, 0, 0))
        scratch = [pltpu.VMEM((H * Wp, Cout), jnp.float32)]
        kernel = _conv3x3_acc_res_kernel if has_res else _conv3x3_acc_kernel

    in_specs = [x_spec, w_spec, b_spec]
    args = [xp, w9, b2]
    if has_res:
        in_specs.append(r_spec)
        args.append(residual.astype(jnp.bfloat16))

    return pl.pallas_call(
        functools.partial(kernel, H=H, W=W, Wp=Wp, roll_jnp=roll_jnp),
        out_shape=jax.ShapeDtypeStruct((N, H, W, Cout), out_dtype),
        grid=grid,
        in_specs=in_specs,
        out_specs=o_spec,
        scratch_shapes=scratch,
        compiler_params=cparams,
        cost_estimate=cost,
    )(*args)


# ---------------------------------------------------------------------------
# SpatialAdaptiveSynBatchNorm2d (ISLA-norm): BN (no affine) + mask-weighted affine + ReLU
# ---------------------------------------------------------------------------

def _isla_bn_kernel(x_ref, m_ref, wv_ref, bv_ref, mu_ref, istd_ref, o_ref, *, relu):
    x = x_ref[...].astype(jnp.float32)            # (thw, C)
    m = m_ref[...]                                # (thw, O) f32 resized layout masks
    # mask-weighted per-object affine -> per-pixel gamma/beta on the MXU (K = n_obj, tiny)
    gamma = jnp.dot(m, wv_ref[...], preferred_element_type=jnp.float32)
    beta = jnp.dot(m, bv_ref[...], preferred_element_type=jnp.float32)
    inv_den = pl.reciprocal(jnp.sum(m, axis=1, keepdims=True) + 1e-6, approx=True)
    y = (gamma * ((x - mu_ref[...]) * istd_ref[...]) + beta) * inv_den
    if relu:
        y = jnp.maximum(y, 0.0)
    o_ref[...] = y.astype(o_ref.dtype)


def spatial_adaptive_bn(x, m_flat, wv, bv, relu=True, eps=1e-5):
    """ISLA-norm.  x: (N,H,W,C) bf16, m_flat: (N,HW,O) f32, wv/bv: (N,O,C) f32.

    TODO(synk): SpatialAdaptiveSynBatchNorm2d source not provided; applies gamma*x_hat+beta with
    the mask-weighted predicted affine (no extra +1 on gamma), training-mode batch statistics.
    TODO(synk): the per-channel sum / sum-of-squares could be fused into the producing conv's
    epilogue to save one HBM sweep of the activation per norm.
    """
    N, H, W, C = x.shape
    HW = H * W
    x_flat = x.reshape(N, HW, C)
    O = m_flat.shape[-1]
    xf = x_flat.astype(jnp.float32)
    mean = jnp.mean(xf, axis=(0, 1))
    var = jnp.maximum(jnp.mean(jnp.square(xf), axis=(0, 1)) - jnp.square(mean), 0.0)
    mu = mean.reshape(1, C)
    istd = jax.lax.rsqrt(var + eps).reshape(1, C)

    thw = 4096 if (HW > 4096 and HW % 4096 == 0) else HW
    out = pl.pallas_call(
        functools.partial(_isla_bn_kernel, relu=relu),
        out_shape=jax.ShapeDtypeStruct((N, HW, C), jnp.bfloat16),
        grid=(N, HW // thw),
        in_specs=[
            pl.BlockSpec((None, thw, C), lambda n, i: (n, i, 0)),
            pl.BlockSpec((None, thw, O), lambda n, i: (n, i, 0)),
            pl.BlockSpec((None, O, C), lambda n, i: (n, 0, 0)),
            pl.BlockSpec((None, O, C), lambda n, i: (n, 0, 0)),
            pl.BlockSpec((1, C), lambda n, i: (0, 0)),
            pl.BlockSpec((1, C), lambda n, i: (0, 0)),
        ],
        out_specs=pl.BlockSpec((None, thw, C), lambda n, i: (n, i, 0)),
        compiler_params=pltpu.CompilerParams(dimension_semantics=("parallel", "parallel")),
    )(x_flat, m_flat, wv.astype(jnp.float32), bv.astype(jnp.float32), mu, istd)
    return out.reshape(N, H, W, C)


# ---------------------------------------------------------------------------
# Glue
# ---------------------------------------------------------------------------

def upsample2x(x_img):
    """F.interpolate(scale_factor=2, mode='nearest'), NHWC.
    TODO(synk): could be folded into the following 3x3 conv as 4 phase convs on the low-res
    input to kill this 4x HBM intermediate entirely."""
    return jnp.repeat(jnp.repeat(x_img, 2, axis=1), 2, axis=2)


# ---------------------------------------------------------------------------
# ResBlock (upsample=True variant)
# ---------------------------------------------------------------------------

def res_block(x, masks, aff, p):
    N, H, W, in_ch = x.shape
    out_ch = p["conv2_w"].shape[-1]
    wv1, bv1, wv2, bv2 = aff
    H2 = 2 * H

    # residual branch: ISLA-BN -> ReLU -> up2x -> conv1 -> ISLA-BN -> ReLU -> conv2
    h = spatial_adaptive_bn(x, masks[H], wv1, bv1, relu=True)
    h = upsample2x(h)                                       # (N, 2H, 2W, in_ch)
    h = conv3x3(h, p["conv1_w"], p["conv1_b"])              # (N, 2H, 2W, h_ch)
    h = spatial_adaptive_bn(h, masks[H2], wv2, bv2, relu=True)

    # shortcut: 1x1 conv at LOW resolution (commutes with nearest up2x) -> 4x fewer FLOPs and no
    # upsampled GEMM input; its add is fused into conv2's epilogue.
    xs = x.reshape(N * H * W, in_ch)
    sc = pallas_matmul(xs, p["csc_w"], p["csc_b"], out_dtype=jnp.bfloat16)
    sc = upsample2x(sc.reshape(N, H, W, out_ch))            # (N, 2H, 2W, out_ch)

    return conv3x3(h, p["conv2_w"], p["conv2_b"], residual=sc)


# ---------------------------------------------------------------------------
# MaskRegressNet (simplified)
# ---------------------------------------------------------------------------

def mask_regress(p, w_vec, bbox):
    # TODO(synk): the real MaskRegressNet (source not provided) uses conv/instance-norm upsampling
    # plus grid_sample placement (masks_to_layout); approximated by fc+sigmoid masks bilinearly
    # resized to MAP_SIZE and restricted to each bbox rectangle.
    b, o, _ = bbox.shape
    m = pallas_matmul(w_vec, p["fc_w"], p["fc_b"], act="sigmoid", out_dtype=jnp.float32)
    m = m.reshape(b, o, MASK_SIZE, MASK_SIZE)
    m = jax.image.resize(m, (b, o, MAP_SIZE, MAP_SIZE), method="linear", antialias=False)
    coords = (jnp.arange(MAP_SIZE, dtype=jnp.float32) + 0.5) / MAP_SIZE
    x0, y0, wd, ht = bbox[..., 0], bbox[..., 1], bbox[..., 2], bbox[..., 3]
    in_y = (coords[None, None, :] >= y0[..., None]) & (coords[None, None, :] < (y0 + ht)[..., None])
    in_x = (coords[None, None, :] >= x0[..., None]) & (coords[None, None, :] < (x0 + wd)[..., None])
    rect = in_y[..., :, None] & in_x[..., None, :]
    return m * rect.astype(m.dtype)


# ---------------------------------------------------------------------------
# Generator forward
# ---------------------------------------------------------------------------

def generator_forward(params, z, bbox, z_im, y):
    b, o, _ = z.shape
    emb = params["label_emb"][y]                              # (b, o, emb_dim)
    # self.mapping is an empty nn.Sequential -> identity
    w_vec = jnp.concatenate([z.reshape(b * o, -1), emb.reshape(b * o, -1)], axis=1)
    bbox_map = mask_regress(params["mask"], w_vec, bbox)      # (b, o, 64, 64)

    # flattened layout masks at every feature resolution used by the ISLA-norm layers
    n_blocks = len(params["blocks"])
    masks = {}
    s = 4
    for _ in range(n_blocks + 1):                             # 4, 8, ..., 128
        m = jax.image.resize(bbox_map, (b, o, s, s), method="linear", antialias=False)
        masks[s] = m.transpose(0, 2, 3, 1).reshape(b, s * s, o).astype(jnp.float32)
        s *= 2

    # all 20 ISLA affine projections (wv1/bv1/wv2/bv2 x 5 blocks) in ONE fused GEMM
    proj = pallas_matmul(w_vec, params["proj_w"], params["proj_b"])        # (b*o, total) f32
    affines, off = [], 0
    for bp in params["blocks"]:
        in_ch = bp["conv1_w"].shape[2]
        h_ch = bp["conv1_w"].shape[3]
        seg = []
        for c in (in_ch, in_ch, h_ch, h_ch):
            seg.append(proj[:, off:off + c].reshape(b, o, c))
            off += c
        affines.append(tuple(seg))

    # fc: z_im -> (b, 16*ch, 4, 4) (PyTorch NCHW view), converted to NHWC
    x = pallas_matmul(z_im, params["fc_w"], params["fc_b"], out_dtype=jnp.bfloat16)
    ch16 = params["fc_w"].shape[1] // 16
    x = x.reshape(b, ch16, 4, 4).transpose(0, 2, 3, 1)        # (b, 4, 4, 16*ch)

    for bp, aff in zip(params["blocks"], affines):            # res1 .. res5
        x = res_block(x, masks, aff, bp)

    # TODO(synk): the NCHW / f32 conversion could be folded into the last conv's epilogue.
    return x.transpose(0, 3, 1, 2).astype(jnp.float32)        # NCHW (b, ch, 128, 128)


# ---------------------------------------------------------------------------
# Deterministic parameter construction (synthetic; mirrors module shapes, bf16 weights)
# ---------------------------------------------------------------------------

def _orth(key, shape):
    return jax.nn.initializers.orthogonal()(key, shape, jnp.float32)


def make_params(key, ch, z_dim, emb_dim, num_classes=10):
    # TODO(synk): spectral_norm power iteration omitted; orthogonal init gives sigma ~= 1 so the
    # normalization is approximately identity.
    num_w = z_dim + emb_dim
    bf = jnp.bfloat16
    ks = jax.random.split(key, 4)
    chans = [(16 * ch, 16 * ch), (16 * ch, 8 * ch), (8 * ch, 4 * ch),
             (4 * ch, 2 * ch), (2 * ch, 1 * ch)]
    blocks, projs = [], []
    bkeys = jax.random.split(ks[2], len(chans))
    for k_i, (ic, oc) in zip(bkeys, chans):
        kk = jax.random.split(k_i, 7)
        blocks.append({
            "conv1_w": _orth(kk[0], (3, 3, ic, oc)).astype(bf), "conv1_b": jnp.zeros((oc,)),
            "conv2_w": _orth(kk[1], (3, 3, oc, oc)).astype(bf), "conv2_b": jnp.zeros((oc,)),
            "csc_w": _orth(kk[2], (ic, oc)).astype(bf), "csc_b": jnp.zeros((oc,)),
        })
        projs.append(jnp.concatenate(
            [_orth(kk[3], (num_w, ic)), _orth(kk[4], (num_w, ic)),
             _orth(kk[5], (num_w, oc)), _orth(kk[6], (num_w, oc))], axis=1))
    proj_w = jnp.concatenate(projs, axis=1).astype(bf)
    return {
        "label_emb": _orth(ks[0], (num_classes, emb_dim)),
        "fc_w": _orth(ks[1], (z_dim, 4 * 4 * 16 * ch)).astype(bf),
        "fc_b": jnp.zeros((4 * 4 * 16 * ch,)),
        "proj_w": proj_w, "proj_b": jnp.zeros((proj_w.shape[1],)),
        "mask": {"fc_w": _orth(ks[3], (num_w, MASK_SIZE * MASK_SIZE)).astype(bf),
                 "fc_b": jnp.zeros((MASK_SIZE * MASK_SIZE,))},
        "blocks": blocks,
    }


# ---------------------------------------------------------------------------

if __name__ == "__main__":
    _detect_roll_convention()

    # standalone conv3x3 check vs XLA's conv (also exercises the Cin-tiled accumulate path,
    # which the small generator below never reaches)
    kc1, kc2 = jax.random.split(jax.random.PRNGKey(42))
    xt = jax.random.normal(kc1, (1, 8, 8, 256), jnp.float32).astype(jnp.bfloat16)
    wt = (0.05 * jax.random.normal(kc2, (3, 3, 256, 64), jnp.float32)).astype(jnp.bfloat16)
    bt = jnp.linspace(-0.1, 0.1, 64).astype(jnp.float32)
    y_ref = jax.lax.conv_general_dilated(
        xt.astype(jnp.float32), wt.astype(jnp.float32), (1, 1), "SAME",
        dimension_numbers=("NHWC", "HWIO", "NHWC")) + bt
    y_direct = conv3x3(xt, wt, bt).astype(jnp.float32)                 # kt = 1 path
    y_tiled = conv3x3(xt, wt, bt, ck_max=128).astype(jnp.float32)      # kt = 2 accumulate path
    assert jnp.allclose(y_direct, y_ref, atol=0.1, rtol=0.05)
    assert jnp.allclose(y_tiled, y_ref, atol=0.1, rtol=0.05)

    # small end-to-end generator forward
    key = jax.random.PRNGKey(0)
    kp, kz, ky, kb1, kb2, kzi = jax.random.split(key, 6)

    # small shapes: ch=4 (vs 64), z dim 32 (vs 128), label embedding 16 (vs 180)
    b, o = 2, 3
    ch, z_dim, emb_dim, num_classes = 4, 32, 16, 10

    params = make_params(kp, ch, z_dim, emb_dim, num_classes=num_classes)

    z = jax.random.normal(kz, (b, o, z_dim), jnp.float32)
    y = jax.random.randint(ky, (b, o), 0, num_classes)
    xy = jax.random.uniform(kb1, (b, o, 2), minval=0.0, maxval=0.5)
    wh = jax.random.uniform(kb2, (b, o, 2), minval=0.25, maxval=0.5)
    bbox = jnp.concatenate([xy, wh], axis=-1).astype(jnp.float32)      # (x, y, w, h) in [0,1]
    z_im = jax.random.normal(kzi, (b, z_dim), jnp.float32)

    fwd = jax.jit(generator_forward)
    out = jax.block_until_ready(fwd(params, z, bbox, z_im, y))

    assert out.shape == (b, ch, 128, 128), out.shape
    assert bool(jnp.all(jnp.isfinite(out)))
    print("KERNEL_OK")
</pallas_src>

<mosaic_0001>
module attributes {stable_mosaic.version = 11 : i64} {
  func.func @kern(%arg0: memref<8x128xf32, #tpu.memory_space<vmem>>, %arg1: memref<8x128xf32, #tpu.memory_space<vmem>>) attributes {dimension_semantics = [], scalar_prefetch = 0 : i64, scratch_operands = 0 : i64, tpu.core_type = #tpu.core_type<tc>} {
    %c0 = arith.constant 0 : index
    %c0_0 = arith.constant 0 : index
    %0 = vector.load %arg0[%c0, %c0_0] : memref<8x128xf32, #tpu.memory_space<vmem>>, vector<8x128xf32>
    %c1_i32 = arith.constant 1 : i32
    %1 = tpu.dynamic_rotate %0 by %c1_i32 dim 0 : vector<8x128xf32>, i32 -> vector<8x128xf32>
    %c0_1 = arith.constant 0 : index
    %c0_2 = arith.constant 0 : index
    %2 = vector.load %arg1[%c0_1, %c0_2] : memref<8x128xf32, #tpu.memory_space<vmem>>, vector<8x128xf32>
    tpu.vector_store %arg1[%c0_1, %c0_2], %1 {strides = array<i32>} : memref<8x128xf32, #tpu.memory_space<vmem>>, vector<8x128xf32>,
    return
  }
}

</mosaic_0001>

<llo_original>
// kernel: tpu_custom_call.1
$region0: #{tpu_custom_call.1}
  #allocation0 [shape = 'u32[]', space=smem, size = 0x4, offset = 0x4, fixed_abs, tag = 'smem constant byte address 0x4 - core index']
  #allocation1 [shape = 'u32[72,128]{1,0:T(1,128)}', space=vmem, size = 0x9000, scoped, tag = 'internal scratch']
  %s0 = inlined_call_operand.hbm [shape: f32[8,128], index: 0, kind: input, shape index: {}]
  %s1 = inlined_call_operand.hbm [shape: f32[8,128], index: 1, kind: output, shape index: {}]
  %s2 = sld [smem:[#allocation0]]
  $region18: #{tpu_custom_call.1} parent=0
    _
  %s4 = ssub.s32 1, %s2
  %s5 = scalar_select 0, %s4, %s2
  $region1: #{tpu_custom_call.1} parent=0
    #allocation2 [shape = 'u8[4096]{0}', space=vmem, size = 0x1000, scoped, tag = 'input window, operand 0, single buffered']
    #allocation3 [shape = 's32[1]{0}', space=sflag, size = 0x4, scoped, tag = 'scoped memory for tpu_custom_call.1']
    #allocation4 [shape = 's32[1]{0}', space=sflag, size = 0x4, scoped, tag = 'scoped memory for tpu_custom_call.1']
    #allocation5 [shape = 'u8[4096]{0}', space=vmem, size = 0x1000, scoped, tag = 'output window, operand 0, single buffered']
    %6 = vsyncpa [#allocation3], 0
    %7 = vsyncpa [#allocation4], 0
    // Predicated region
    $region2: #{tpu_custom_call.1} parent=1 // pred_check
      _
    $region3: #{tpu_custom_call.1} parent=1 // pred_check_branch
      %9 = sbr.rel (0) target = $region5
    $region4: #{tpu_custom_call.1} parent=1 // pred_region
      %11 = vsyncadd [#allocation3], 0
      %s13 = sshll.u32 %s0, 4
      %s14 = int_to_ptr.hbm [resolvable:$true] %s13
      %s15 = sshll.u32 [#allocation2], 4
      %s16 = int_to_ptr.vmem [resolvable:$true] %s15
      %18 = dma.hbm_to_vmem [thread:$0]  %s14, 128, %s16, [#allocation3]
    $region5: #{tpu_custom_call.1} parent=1 // pred_fallthru
      _
    // Predicated region
    $region6: #{tpu_custom_call.1} parent=1 // pred_check
      _
    $region7: #{tpu_custom_call.1} parent=1 // pred_check_branch
      %20 = sbr.rel (0) target = $region9
    $region8: #{tpu_custom_call.1} parent=1 // pred_region
      %22 = dma.done [#allocation3], 128
    $region9: #{tpu_custom_call.1} parent=1 // pred_fallthru
      _
    %v23 = vld [vmem:[#allocation2] sm:$0xff]
    %v24 = vrot.slane %v23, 7
    %25 = vst [vmem:[#allocation5] sm:$0xff] %v24
    // Predicated region
    $region10: #{tpu_custom_call.1} parent=1 // pred_check
      _
    $region11: #{tpu_custom_call.1} parent=1 // pred_check_branch
      %27 = sbr.rel (0) target = $region13
    $region12: #{tpu_custom_call.1} parent=1 // pred_region
      %29 = vsyncadd [#allocation4], 0
      %s31 = sshll.u32 [#allocation5], 4
      %s32 = int_to_ptr.vmem [resolvable:$true] %s31
      %s33 = sshll.u32 %s1, 4
      %s34 = int_to_ptr.hbm [resolvable:$true] %s33
      %36 = dma.vmem_to_hbm [thread:$0]  %s32, 128, %s34, [#allocation4]
    $region13: #{tpu_custom_call.1} parent=1 // pred_fallthru
      _
    // Predicated region
    $region14: #{tpu_custom_call.1} parent=1 // pred_check
      _
    $region15: #{tpu_custom_call.1} parent=1 // pred_check_branch
      %38 = sbr.rel (0) target = $region17
    $region16: #{tpu_custom_call.1} parent=1 // pred_region
      %40 = dma.done [#allocation4], 128
    $region17: #{tpu_custom_call.1} parent=1 // pred_fallthru
      _
    %41 = vsyncpa [#allocation3], 1
    %42 = vsyncpa [#allocation4], 1

</llo_original>
